<compile_context>
chip_gen: v7x
topology: tpu7x:2x2x1
jax: 0.10.0
libtpu: 0.0.40
codegen_flags: <defaults>
</compile_context>

<pallas_src>
import functools

import jax
import jax.numpy as jnp
from jax import lax
from jax.experimental import pallas as pl
from jax.experimental.pallas import tpu as pltpu


# ----------------------------------------------------------------------------
# Kernel 1: fused Q/K/V 1x1-conv projection (runs once per image).
# ----------------------------------------------------------------------------
def pam_project_kernel(x_ref, wq_ref, bq_ref, wk_ref, bk_ref, wv_ref, bv_ref,
                       q_ref, k_ref, v_ref):
    x = x_ref[0].astype(jnp.bfloat16)                         # (C, T)
    q = jnp.dot(wq_ref[...], x, preferred_element_type=jnp.float32) + bq_ref[...]
    k = jnp.dot(wk_ref[...], x, preferred_element_type=jnp.float32) + bk_ref[...]
    v = jnp.dot(wv_ref[...], x, preferred_element_type=jnp.float32) + bv_ref[...]
    q_ref[0] = q.astype(jnp.bfloat16)                         # (C8, T)
    k_ref[0] = k.astype(jnp.bfloat16)                         # (C8, T)
    v_ref[0] = v.astype(jnp.bfloat16)                         # (C,  T)


# ----------------------------------------------------------------------------
# Kernel 2: flash-style position attention over pre-projected Q/K/V.
# ----------------------------------------------------------------------------
def pam_flash_kernel(x_q_ref, q_ref, k_ref, v_ref, gamma_ref, out_ref,
                     m_scr, l_scr, acc_scr, *, valid_hw, padded):
    ki = pl.program_id(2)
    tk = k_ref.shape[2]

    @pl.when(ki == 0)
    def _init():
        m_scr[...] = jnp.full(m_scr.shape, -jnp.inf, dtype=m_scr.dtype)
        l_scr[...] = jnp.zeros(l_scr.shape, dtype=l_scr.dtype)
        acc_scr[...] = jnp.zeros(acc_scr.shape, dtype=acc_scr.dtype)

    q = q_ref[0]                                              # (C8, TQ) bf16
    k = k_ref[0]                                              # (C8, TK) bf16
    v = v_ref[0]                                              # (C,  TK) bf16

    # energy tile in (TK, TQ) orientation: s[j, i] = <k_j, q_i>.  The
    # contraction is on dim 0 of both operands; only the small (C8, TK)
    # k operand needs an internal transpose (cheap XLU filler).
    s = lax.dot_general(k, q,
                        dimension_numbers=(((0,), (0,)), ((), ())),
                        preferred_element_type=jnp.float32)   # (TK, TQ)

    if padded:
        # Mask spatial positions past the real HW (zero-padded keys).  Every
        # key tile keeps at least one valid key (padding < 128 <= tk), so the
        # online-softmax max is always taken over real data (no NaNs).
        key_idx = ki * tk + lax.broadcasted_iota(jnp.int32, (tk, 1), 0)
        s = jnp.where(key_idx < valid_hw, s, -jnp.inf)

    # online softmax over the key axis (sublane axis of s); f32 math.
    m_prev = m_scr[...]                                             # (1, TQ)
    m_new = jnp.maximum(m_prev, jnp.max(s, axis=0, keepdims=True))  # (1, TQ)
    alpha = jnp.exp(m_prev - m_new)                                 # (1, TQ)
    p = jnp.exp(s - m_new)                                          # (TK, TQ)

    l_scr[...] = alpha * l_scr[...] + jnp.sum(p, axis=0, keepdims=True)
    acc_scr[...] = alpha * acc_scr[...] + jnp.dot(
        v, p.astype(jnp.bfloat16),
        preferred_element_type=jnp.float32)                         # (C, TQ)
    m_scr[...] = m_new

    @pl.when(ki == pl.num_programs(2) - 1)
    def _finalize():
        gamma = gamma_ref[0, 0]
        out_ref[0] = (gamma * (acc_scr[...] / l_scr[...])
                      + x_q_ref[0]).astype(out_ref.dtype)


# ----------------------------------------------------------------------------
# Wrapper.
# ----------------------------------------------------------------------------
def _round_up(n, m):
    return (n + m - 1) // m * m


def _spatial_tile(hw, preferred):
    """Largest multiple-of-128 divisor of hw (hw is a multiple of 128)."""
    t = min(preferred, hw)
    t -= t % 128
    t = max(t, 128)
    while hw % t:
        t -= 128
    return t


def _vmem_limit_bytes():
    """~60% of physical VMEM, capped at 64 MiB (generation-aware: v7x has
    only 64 MiB per TensorCore; v5e/v6e have 128 MiB)."""
    cap = 128 * 1024 * 1024
    try:
        cap = getattr(pltpu.get_tpu_info(), "vmem_capacity_bytes", cap)
    except Exception:
        pass
    return int(min(cap * 3 // 5, 64 * 1024 * 1024))


def pam_forward(x_nchw, wq, bq, wk, bk, wv, bv, gamma, *, tq=512, tk=512):
    """x_nchw: (B, C, H, W) f32.
    wq/wk: (C8, C), bq/bk: (C8, 1)  -- query/key 1x1 convs, (out, in) layout.
    wv: (C, C),  bv: (C, 1)         -- value 1x1 conv.
    gamma: (1, 1) scalar parameter."""
    B, C, H, W = x_nchw.shape
    HW = H * W
    C8 = wq.shape[0]
    assert C % 8 == 0, "channel count must be a multiple of 8"

    hw_pad = _round_up(HW, 128)
    padded = hw_pad != HW

    tq = _spatial_tile(hw_pad, tq)
    tk = _spatial_tile(hw_pad, tk)
    # keep at least two (b, qi) work items so v7x's two TensorCores stay busy.
    while B * (hw_pad // tq) < 2 and tq % 256 == 0:
        tq //= 2
    nq, nk = hw_pad // tq, hw_pad // tk

    vmem_limit = _vmem_limit_bytes()

    x_flat = x_nchw.reshape(B, C, HW)               # free reshape, no transpose
    if padded:
        x_flat = jnp.pad(x_flat, ((0, 0), (0, 0), (0, hw_pad - HW)))

    wq_b = wq.astype(jnp.bfloat16)
    wk_b = wk.astype(jnp.bfloat16)
    wv_b = wv.astype(jnp.bfloat16)

    rep = lambda b, t: (0, 0)                       # replicated weight blocks
    tp = _spatial_tile(hw_pad, 512)
    ntp = hw_pad // tp

    # --- pass 1: project Q/K/V once per image, store bf16 -------------------
    q_all, k_all, v_all = pl.pallas_call(
        pam_project_kernel,
        out_shape=(jax.ShapeDtypeStruct((B, C8, hw_pad), jnp.bfloat16),
                   jax.ShapeDtypeStruct((B, C8, hw_pad), jnp.bfloat16),
                   jax.ShapeDtypeStruct((B, C, hw_pad), jnp.bfloat16)),
        grid_spec=pltpu.PrefetchScalarGridSpec(
            num_scalar_prefetch=0,
            grid=(B, ntp),
            in_specs=[
                pl.BlockSpec((1, C, tp), lambda b, t: (b, 0, t)),  # x tile
                pl.BlockSpec((C8, C), rep),                        # wq
                pl.BlockSpec((C8, 1), rep),                        # bq
                pl.BlockSpec((C8, C), rep),                        # wk
                pl.BlockSpec((C8, 1), rep),                        # bk
                pl.BlockSpec((C, C), rep),                         # wv
                pl.BlockSpec((C, 1), rep),                         # bv
            ],
            out_specs=[
                pl.BlockSpec((1, C8, tp), lambda b, t: (b, 0, t)),
                pl.BlockSpec((1, C8, tp), lambda b, t: (b, 0, t)),
                pl.BlockSpec((1, C, tp), lambda b, t: (b, 0, t)),
            ],
        ),
        compiler_params=pltpu.CompilerParams(
            dimension_semantics=("parallel", "parallel"),
            vmem_limit_bytes=vmem_limit,
        ),
    )(x_flat, wq_b, bq, wk_b, bk, wv_b, bv)

    # --- pass 2: flash attention over the pre-projected Q/K/V ---------------
    kern = functools.partial(pam_flash_kernel, valid_hw=HW, padded=padded)
    out_flat = pl.pallas_call(
        kern,
        out_shape=jax.ShapeDtypeStruct((B, C, hw_pad), jnp.float32),
        grid_spec=pltpu.PrefetchScalarGridSpec(
            num_scalar_prefetch=0,
            grid=(B, nq, nk),
            in_specs=[
                pl.BlockSpec((1, C, tq), lambda b, qi, ki: (b, 0, qi)),   # x (residual)
                pl.BlockSpec((1, C8, tq), lambda b, qi, ki: (b, 0, qi)),  # Q tile
                pl.BlockSpec((1, C8, tk), lambda b, qi, ki: (b, 0, ki)),  # K tile
                pl.BlockSpec((1, C, tk), lambda b, qi, ki: (b, 0, ki)),   # V tile
                pl.BlockSpec(memory_space=pltpu.MemorySpace.SMEM),        # gamma
            ],
            out_specs=pl.BlockSpec((1, C, tq), lambda b, qi, ki: (b, 0, qi)),
            scratch_shapes=[
                pltpu.VMEM((1, tq), jnp.float32),     # running max  m
                pltpu.VMEM((1, tq), jnp.float32),     # running sum  l
                pltpu.VMEM((C, tq), jnp.float32),     # output accumulator
            ],
        ),
        compiler_params=pltpu.CompilerParams(
            dimension_semantics=("parallel", "parallel", "arbitrary"),
            vmem_limit_bytes=vmem_limit,
        ),
    )(x_flat, q_all, k_all, v_all, gamma)

    if padded:
        out_flat = out_flat[:, :, :HW]
    return out_flat.reshape(B, C, H, W)


# ----------------------------------------------------------------------------
# Pure-JAX f32 reference mirroring the PyTorch forward.
# ----------------------------------------------------------------------------
def pam_reference(x_nchw, wq, bq, wk, bk, wv, bv, gamma):
    B, C, H, W = x_nchw.shape
    HW = H * W
    xf = x_nchw.reshape(B, C, HW)
    q = jnp.einsum('oc,bcp->bop', wq, xf) + bq        # (B, C8, HW)
    k = jnp.einsum('oc,bcp->bop', wk, xf) + bk        # (B, C8, HW)
    v = jnp.einsum('oc,bcp->bop', wv, xf) + bv        # (B, C,  HW)
    energy = jnp.einsum('bci,bcj->bij', q, k)         # energy[i, j] = q_i . k_j
    attn = jax.nn.softmax(energy, axis=-1)
    out = jnp.einsum('bcj,bij->bci', v, attn)         # (B, C, HW)
    out = gamma[0, 0] * out + xf
    return out.reshape(B, C, H, W)


if __name__ == "__main__":
    key = jax.random.PRNGKey(0)
    B, C, H, W = 2, 32, 16, 16        # in_dim = 32 -> C//8 = 4, HW = 256
    C8 = C // 8

    ks = jax.random.split(key, 8)
    x = jax.random.normal(ks[0], (B, C, H, W), dtype=jnp.float32)

    # 1x1-conv params as (out, in) matrices (== torch weight[:, :, 0, 0]).
    wq = jax.random.normal(ks[1], (C8, C), dtype=jnp.float32) * 0.1
    bq = jax.random.normal(ks[2], (C8, 1), dtype=jnp.float32) * 0.1
    wk = jax.random.normal(ks[3], (C8, C), dtype=jnp.float32) * 0.1
    bk = jax.random.normal(ks[4], (C8, 1), dtype=jnp.float32) * 0.1
    wv = jax.random.normal(ks[5], (C, C), dtype=jnp.float32) * 0.1
    bv = jax.random.normal(ks[6], (C, 1), dtype=jnp.float32) * 0.1
    # gamma is zero-initialized in the module; use a nonzero value so the
    # attention path actually contributes to the checked output.
    gamma = jnp.full((1, 1), 0.5, dtype=jnp.float32)

    out = pam_forward(x, wq, bq, wk, bk, wv, bv, gamma)
    out = jax.block_until_ready(out)

    ref = pam_reference(x, wq, bq, wk, bk, wv, bv, gamma)
    assert out.shape == (B, C, H, W)
    # bf16 MXU operands with f32 accumulation -> ~1e-2-level agreement vs f32.
    assert jnp.allclose(out, ref, atol=3e-2, rtol=2e-2), "mismatch vs reference"

    print("KERNEL_OK")
</pallas_src>

<mosaic_0001>
module attributes {stable_mosaic.version = 11 : i64} {
  func.func @pam_project_kernel(%arg0: i32, %arg1: i32, %arg2: memref<1x32x256xf32, #tpu.memory_space<vmem>>, %arg3: memref<4x32xbf16, #tpu.memory_space<vmem>>, %arg4: memref<4x1xf32, #tpu.memory_space<vmem>>, %arg5: memref<4x32xbf16, #tpu.memory_space<vmem>>, %arg6: memref<4x1xf32, #tpu.memory_space<vmem>>, %arg7: memref<32x32xbf16, #tpu.memory_space<vmem>>, %arg8: memref<32x1xf32, #tpu.memory_space<vmem>>, %arg9: memref<1x4x256xbf16, #tpu.memory_space<vmem>>, %arg10: memref<1x4x256xbf16, #tpu.memory_space<vmem>>, %arg11: memref<1x32x256xbf16, #tpu.memory_space<vmem>>) attributes {dimension_semantics = [#tpu.dimension_semantics<parallel>, #tpu.dimension_semantics<parallel>], iteration_bounds = array<i64: 2, 1>, scalar_prefetch = 0 : i64, scratch_operands = 0 : i64, tpu.core_type = #tpu.core_type<tc>, window_params = [{transform_indices = @transform_0, window_bounds = array<i64: 1, 32, 256>}, {pipeline_mode = #tpu.pipeline_mode<synchronous>, transform_indices = @transform_1, window_bounds = array<i64: 4, 32>}, {pipeline_mode = #tpu.pipeline_mode<synchronous>, transform_indices = @transform_2, window_bounds = array<i64: 4, 1>}, {pipeline_mode = #tpu.pipeline_mode<synchronous>, transform_indices = @transform_3, window_bounds = array<i64: 4, 32>}, {pipeline_mode = #tpu.pipeline_mode<synchronous>, transform_indices = @transform_4, window_bounds = array<i64: 4, 1>}, {pipeline_mode = #tpu.pipeline_mode<synchronous>, transform_indices = @transform_5, window_bounds = array<i64: 32, 32>}, {pipeline_mode = #tpu.pipeline_mode<synchronous>, transform_indices = @transform_6, window_bounds = array<i64: 32, 1>}, {transform_indices = @transform_7, window_bounds = array<i64: 1, 4, 256>}, {transform_indices = @transform_8, window_bounds = array<i64: 1, 4, 256>}, {transform_indices = @transform_9, window_bounds = array<i64: 1, 32, 256>}]} {
    %c0 = arith.constant 0 : index
    %c0_0 = arith.constant 0 : index
    %c0_1 = arith.constant 0 : index
    %0 = vector.load %arg2[%c0, %c0_0, %c0_1] : memref<1x32x256xf32, #tpu.memory_space<vmem>>, vector<1x32x256xf32>
    %1 = vector.shape_cast %0 : vector<1x32x256xf32> to vector<32x256xf32>
    %2 = arith.truncf %1 : vector<32x256xf32> to vector<32x256xbf16>
    %c0_2 = arith.constant 0 : index
    %c0_3 = arith.constant 0 : index
    %3 = vector.load %arg3[%c0_2, %c0_3] : memref<4x32xbf16, #tpu.memory_space<vmem>>, vector<4x32xbf16>
    %cst = arith.constant dense<0.000000e+00> : vector<4x256xf32>
    %4 = tpu.matmul %3, %2, %cst {dimension_numbers = #tpu.dot_dimension_numbers<[1], [0], [0], [1], [0, 0, 1, 1], [], []>} : vector<4x32xbf16>, vector<32x256xbf16>, vector<4x256xf32> -> vector<4x256xf32>
    %c0_4 = arith.constant 0 : index
    %c0_5 = arith.constant 0 : index
    %5 = vector.load %arg4[%c0_4, %c0_5] : memref<4x1xf32, #tpu.memory_space<vmem>>, vector<4x1xf32>
    %6 = vector.broadcast %5 : vector<4x1xf32> to vector<4x256xf32>
    %7 = arith.addf %4, %6 : vector<4x256xf32>
    %c0_6 = arith.constant 0 : index
    %c0_7 = arith.constant 0 : index
    %8 = vector.load %arg5[%c0_6, %c0_7] : memref<4x32xbf16, #tpu.memory_space<vmem>>, vector<4x32xbf16>
    %cst_8 = arith.constant dense<0.000000e+00> : vector<4x256xf32>
    %9 = tpu.matmul %8, %2, %cst_8 {dimension_numbers = #tpu.dot_dimension_numbers<[1], [0], [0], [1], [0, 0, 1, 1], [], []>} : vector<4x32xbf16>, vector<32x256xbf16>, vector<4x256xf32> -> vector<4x256xf32>
    %c0_9 = arith.constant 0 : index
    %c0_10 = arith.constant 0 : index
    %10 = vector.load %arg6[%c0_9, %c0_10] : memref<4x1xf32, #tpu.memory_space<vmem>>, vector<4x1xf32>
    %11 = vector.broadcast %10 : vector<4x1xf32> to vector<4x256xf32>
    %12 = arith.addf %9, %11 : vector<4x256xf32>
    %c0_11 = arith.constant 0 : index
    %c0_12 = arith.constant 0 : index
    %13 = vector.load %arg7[%c0_11, %c0_12] : memref<32x32xbf16, #tpu.memory_space<vmem>>, vector<32x32xbf16>
    %cst_13 = arith.constant dense<0.000000e+00> : vector<32x256xf32>
    %14 = tpu.matmul %13, %2, %cst_13 {dimension_numbers = #tpu.dot_dimension_numbers<[1], [0], [0], [1], [0, 0, 1, 1], [], []>} : vector<32x32xbf16>, vector<32x256xbf16>, vector<32x256xf32> -> vector<32x256xf32>
    %c0_14 = arith.constant 0 : index
    %c0_15 = arith.constant 0 : index
    %15 = vector.load %arg8[%c0_14, %c0_15] : memref<32x1xf32, #tpu.memory_space<vmem>>, vector<32x1xf32>
    %16 = vector.broadcast %15 : vector<32x1xf32> to vector<32x256xf32>
    %17 = arith.addf %14, %16 : vector<32x256xf32>
    %18 = arith.truncf %7 : vector<4x256xf32> to vector<4x256xbf16>
    %c0_16 = arith.constant 0 : index
    %c0_17 = arith.constant 0 : index
    %c0_18 = arith.constant 0 : index
    %19 = vector.load %arg9[%c0_16, %c0_17, %c0_18] : memref<1x4x256xbf16, #tpu.memory_space<vmem>>, vector<1x4x256xbf16>
    %20 = vector.shape_cast %19 : vector<1x4x256xbf16> to vector<4x256xbf16>
    %21 = vector.shape_cast %18 : vector<4x256xbf16> to vector<1x4x256xbf16>
    tpu.vector_store %arg9[%c0_16, %c0_17, %c0_18], %21 {strides = array<i32>} : memref<1x4x256xbf16, #tpu.memory_space<vmem>>, vector<1x4x256xbf16>,
    %22 = arith.truncf %12 : vector<4x256xf32> to vector<4x256xbf16>
    %c0_19 = arith.constant 0 : index
    %c0_20 = arith.constant 0 : index
    %c0_21 = arith.constant 0 : index
    %23 = vector.load %arg10[%c0_19, %c0_20, %c0_21] : memref<1x4x256xbf16, #tpu.memory_space<vmem>>, vector<1x4x256xbf16>
    %24 = vector.shape_cast %23 : vector<1x4x256xbf16> to vector<4x256xbf16>
    %25 = vector.shape_cast %22 : vector<4x256xbf16> to vector<1x4x256xbf16>
    tpu.vector_store %arg10[%c0_19, %c0_20, %c0_21], %25 {strides = array<i32>} : memref<1x4x256xbf16, #tpu.memory_space<vmem>>, vector<1x4x256xbf16>,
    %26 = arith.truncf %17 : vector<32x256xf32> to vector<32x256xbf16>
    %c0_22 = arith.constant 0 : index
    %c0_23 = arith.constant 0 : index
    %c0_24 = arith.constant 0 : index
    %27 = vector.load %arg11[%c0_22, %c0_23, %c0_24] : memref<1x32x256xbf16, #tpu.memory_space<vmem>>, vector<1x32x256xbf16>
    %28 = vector.shape_cast %27 : vector<1x32x256xbf16> to vector<32x256xbf16>
    %29 = vector.shape_cast %26 : vector<32x256xbf16> to vector<1x32x256xbf16>
    tpu.vector_store %arg11[%c0_22, %c0_23, %c0_24], %29 {strides = array<i32>} : memref<1x32x256xbf16, #tpu.memory_space<vmem>>, vector<1x32x256xbf16>,
    return
  }
  func.func @transform_0(%arg0: i32, %arg1: i32) -> (i32, i32, i32) {
    %c0_i32 = arith.constant 0 : i32
    %c0_i32_0 = arith.constant 0 : i32
    return %arg0, %c0_i32, %arg1 : i32, i32, i32
  }
  func.func @transform_1(%arg0: i32, %arg1: i32) -> (i32, i32) {
    %c0_i32 = arith.constant 0 : i32
    %c0_i32_0 = arith.constant 0 : i32
    %c0_i32_1 = arith.constant 0 : i32
    return %c0_i32, %c0_i32_0 : i32, i32
  }
  func.func @transform_2(%arg0: i32, %arg1: i32) -> (i32, i32) {
    %c0_i32 = arith.constant 0 : i32
    %c0_i32_0 = arith.constant 0 : i32
    %c0_i32_1 = arith.constant 0 : i32
    return %c0_i32, %c0_i32_0 : i32, i32
  }
  func.func @transform_3(%arg0: i32, %arg1: i32) -> (i32, i32) {
    %c0_i32 = arith.constant 0 : i32
    %c0_i32_0 = arith.constant 0 : i32
    %c0_i32_1 = arith.constant 0 : i32
    return %c0_i32, %c0_i32_0 : i32, i32
  }
  func.func @transform_4(%arg0: i32, %arg1: i32) -> (i32, i32) {
    %c0_i32 = arith.constant 0 : i32
    %c0_i32_0 = arith.constant 0 : i32
    %c0_i32_1 = arith.constant 0 : i32
    return %c0_i32, %c0_i32_0 : i32, i32
  }
  func.func @transform_5(%arg0: i32, %arg1: i32) -> (i32, i32) {
    %c0_i32 = arith.constant 0 : i32
    %c0_i32_0 = arith.constant 0 : i32
    %c0_i32_1 = arith.constant 0 : i32
    return %c0_i32, %c0_i32_0 : i32, i32
  }
  func.func @transform_6(%arg0: i32, %arg1: i32) -> (i32, i32) {
    %c0_i32 = arith.constant 0 : i32
    %c0_i32_0 = arith.constant 0 : i32
    %c0_i32_1 = arith.constant 0 : i32
    return %c0_i32, %c0_i32_0 : i32, i32
  }
  func.func @transform_7(%arg0: i32, %arg1: i32) -> (i32, i32, i32) {
    %c0_i32 = arith.constant 0 : i32
    %c0_i32_0 = arith.constant 0 : i32
    return %arg0, %c0_i32, %arg1 : i32, i32, i32
  }
  func.func @transform_8(%arg0: i32, %arg1: i32) -> (i32, i32, i32) {
    %c0_i32 = arith.constant 0 : i32
    %c0_i32_0 = arith.constant 0 : i32
    return %arg0, %c0_i32, %arg1 : i32, i32, i32
  }
  func.func @transform_9(%arg0: i32, %arg1: i32) -> (i32, i32, i32) {
    %c0_i32 = arith.constant 0 : i32
    %c0_i32_0 = arith.constant 0 : i32
    return %arg0, %c0_i32, %arg1 : i32, i32, i32
  }
}

</mosaic_0001>

<llo_original>
// kernel: tpu_custom_call.1
$region0: #{tpu_custom_call.1}
  #allocation0 [shape = 'u32[]', space=smem, size = 0x4, offset = 0x4, fixed_abs, tag = 'smem constant byte address 0x4 - core index']
  #allocation1 [shape = 'u32[144,128]{1,0:T(1,128)}', space=vmem, size = 0x12000, scoped, tag = 'internal scratch']
  %s0 = inlined_call_operand.hbm [shape: f32[2,32,256], index: 0, kind: input, shape index: {}]
  %s1 = inlined_call_operand.hbm [shape: bf16[4,32], index: 1, kind: input, shape index: {}]
  %s2 = inlined_call_operand.hbm [shape: f32[4,1], index: 2, kind: input, shape index: {}]
  %s3 = inlined_call_operand.hbm [shape: bf16[4,32], index: 3, kind: input, shape index: {}]
  %s4 = inlined_call_operand.hbm [shape: f32[4,1], index: 4, kind: input, shape index: {}]
  %s5 = inlined_call_operand.hbm [shape: bf16[32,32], index: 5, kind: input, shape index: {}]
  %s6 = inlined_call_operand.hbm [shape: f32[32,1], index: 6, kind: input, shape index: {}]
  %s7 = inlined_call_operand.hbm [shape: bf16[2,4,256], index: 7, kind: output, shape index: {0}]
  %s8 = inlined_call_operand.hbm [shape: bf16[2,4,256], index: 8, kind: output, shape index: {1}]
  %s9 = inlined_call_operand.hbm [shape: bf16[2,32,256], index: 9, kind: output, shape index: {2}]
  %10 = xla_tuple %s7, %s8, %s9
  %s11 = sld [smem:[#allocation0]]
  $region105: #{tpu_custom_call.1} parent=0
    _
  %s13 = ssub.s32 1, %s11
  %s14 = scalar_select 0, %s13, %s11
  $region1: #{tpu_custom_call.1} parent=0
    #allocation2 [shape = 'u8[65536]{0}', space=vmem, size = 0x10000, scoped, tag = 'input window, operand 0']
    #allocation3 [shape = 's32[2]{0}', space=sflag, size = 0x8, scoped, tag = 'scoped memory for tpu_custom_call.1']
    #allocation4 [shape = 's32[2]{0}', space=sflag, size = 0x8, scoped, tag = 'scoped memory for tpu_custom_call.1']
    #allocation5 [shape = 'u8[1024]{0}', space=vmem, size = 0x400, scoped, tag = 'input window, operand 1, single buffered']
    #allocation6 [shape = 's32[1]{0}', space=sflag, size = 0x4, scoped, tag = 'scoped memory for tpu_custom_call.1']
    #allocation7 [shape = 'u8[2048]{0}', space=vmem, size = 0x800, scoped, tag = 'input window, operand 2, single buffered']
    #allocation8 [shape = 'u8[1024]{0}', space=vmem, size = 0x400, scoped, tag = 'input window, operand 3, single buffered']
    #allocation9 [shape = 's32[1]{0}', space=sflag, size = 0x4, scoped, tag = 'scoped memory for tpu_custom_call.1']
    #allocation10 [shape = 'u8[2048]{0}', space=vmem, size = 0x800, scoped, tag = 'input window, operand 4, single buffered']
    #allocation11 [shape = 'u8[8192]{0}', space=vmem, size = 0x2000, scoped, tag = 'input window, operand 5, single buffered']
    #allocation12 [shape = 's32[1]{0}', space=sflag, size = 0x4, scoped, tag = 'scoped memory for tpu_custom_call.1']
    #allocation13 [shape = 'u8[16384]{0}', space=vmem, size = 0x4000, scoped, tag = 'input window, operand 6, single buffered']
    #allocation14 [shape = 'u8[4096]{0}', space=vmem, size = 0x1000, scoped, tag = 'output window, operand 0']
    #allocation15 [shape = 'u8[4096]{0}', space=vmem, size = 0x1000, scoped, tag = 'output window, operand 1']
    #allocation16 [shape = 's32[2]{0}', space=sflag, size = 0x8, scoped, tag = 'scoped memory for tpu_custom_call.1']
    #allocation17 [shape = 'u8[32768]{0}', space=vmem, size = 0x8000, scoped, tag = 'output window, operand 2']
    %15 = vsyncpa [#allocation3], 0
    %s16 = scalar_lea.sflag [#allocation3], 1
    %17 = vsyncpa %s16, 0
    %18 = vsyncpa [#allocation6], 0
    %19 = vsyncpa [#allocation9], 0
    %20 = vsyncpa [#allocation12], 0
    %21 = vsyncpa [#allocation4], 0
    %s22 = scalar_lea.sflag [#allocation4], 1
    %23 = vsyncpa %s22, 0
    %24 = vsyncpa [#allocation16], 0
    %s25 = scalar_lea.sflag [#allocation16], 1
    %26 = vsyncpa %s25, 0
    loop: start=0, step=1, limit=4
    $region2: #{tpu_custom_call.1} parent=1 // loop_pre_header
      _
    $region3: #{tpu_custom_call.1} parent=1 // loop_header
      %s28 = sphi 0, %s32
      %p29 = scmp.ge.s32.totalorder %s28, 4
      %s35 = sphi 0, %s47
      %s36 = sphi 0, %s43
      %s37 = sphi 0, %s35
      %s38 = sphi 0, %s36
      %s39 = sphi 0, %s37
      %s40 = sphi 0, %s38
      %s52 = sphi 0, %s54
      %s55 = sphi 0, %s52
      %s56 = sphi 0, %s55
      %s72 = sphi 0, %s56
      %s76 = sphi 0, %s76
      %s78 = sphi 0, %s76
      %s79 = sphi 0, %s78
      %s93 = sphi 0, %s79
      %s97 = sphi 0, %s97
      %s99 = sphi 0, %s97
      %s100 = sphi 0, %s99
      %s114 = sphi 0, %s100
      %s118 = sphi 0, %s118
      %s120 = sphi 0, %s118
      %s121 = sphi 0, %s120
      %s135 = sphi 0, %s121
      %s139 = sphi 0, %s139
      %s141 = sphi 0, %s139
      %s142 = sphi 0, %s141
      %s156 = sphi 0, %s142
      %s160 = sphi 0, %s160
      %s162 = sphi 0, %s160
      %s163 = sphi 0, %s162
      %s177 = sphi 0, %s163
      %s181 = sphi 0, %s181
      %s183 = sphi 0, %s181
      %s184 = sphi 0, %s183
      %s198 = sphi 0, %s184
      %s206 = sphi 0, %s208
      %s209 = sphi 0, %s206
      %s210 = sphi 0, %s209
      %s226 = sphi 0, %s210
      %s234 = sphi 0, %s236
      %s237 = sphi 0, %s234
      %s238 = sphi 0, %s237
      %s254 = sphi 0, %s238
      %s262 = sphi 0, %s264
      %s265 = sphi 0, %s262
      %s266 = sphi 0, %s265
      %s282 = sphi 0, %s266
    $region4: #{tpu_custom_call.1} parent=1 // loop_header_branch
      %31 = sbr.rel (%p29) target = $region8
    $region5: #{tpu_custom_call.1} parent=1 // loop_body
      %s33 = ssub.s32 %s28, 1
      %s34 = ssub.s32 %s28, 2
      %s41 = sadd.s32 1, %s36
      %p42 = scmp.ge.s32.totalorder %s41, 1
      %s43 = scalar_select %p42, 0, %s41
      %s44 = sadd.s32 1, %s35
      %s45 = scalar_select %p42, %s44, %s35
      %p46 = scmp.ge.s32.totalorder %s45, 2
      %s47 = scalar_select %p46, 0, %s45
      %s48 = ssub.s32 %s35, %s47
      %s49 = ssub.s32 %s36, %s43
      %s50 = sor.u32 %s48, %s49
      %p51 = scmp.eq.s32.totalorder %s50, 0
      %s53 = sadd.s32 %s52, 1
      %s54 = scalar_select %p51, %s52, %s53
      %p57 = pneg %p51
      %p58 = scmp.eq.s32.totalorder %s28, 1
      %p59 = por %p57, %p58
      %p60 = scmp.ne.s32.totalorder %s52, %s55
      %p61 = scmp.eq.s32.totalorder %s28, 0
      %p62 = por %p60, %p61
      %p63 = scmp.ne.s32.totalorder %s52, %s55
      %p64 = scmp.eq.s32.totalorder %s33, 1
      %p65 = por %p63, %p64
      %p66 = scmp.ne.s32.totalorder %s55, %s56
      %p67 = scmp.eq.s32.totalorder %s33, 0
      %p68 = por %p66, %p67
      %p69 = scmp.ne.s32.totalorder %s55, %s56
      %p70 = scmp.eq.s32.totalorder %s34, 1
      %p71 = por %p69, %p70
      %p73 = scmp.ne.s32.totalorder %s56, %s72
      %p74 = scmp.eq.s32.totalorder %s34, 0
      %p75 = por %p73, %p74
      %s77 = sadd.s32 %s76, 1
      %p80 = scmp.eq.s32.totalorder %s28, 1
      %p81 = scmp.ne.s32.totalorder %s76, %s78
      %p82 = scmp.eq.s32.totalorder %s28, 0
      %p83 = por %p81, %p82
      %p84 = scmp.ne.s32.totalorder %s76, %s78
      %p85 = scmp.eq.s32.totalorder %s33, 1
      %p86 = por %p84, %p85
      %p87 = scmp.ne.s32.totalorder %s78, %s79
      %p88 = scmp.eq.s32.totalorder %s33, 0
      %p89 = por %p87, %p88
      %p90 = scmp.ne.s32.totalorder %s78, %s79
      %p91 = scmp.eq.s32.totalorder %s34, 1
      %p92 = por %p90, %p91
      %p94 = scmp.ne.s32.totalorder %s79, %s93
      %p95 = scmp.eq.s32.totalorder %s34, 0
      %p96 = por %p94, %p95
      %s98 = sadd.s32 %s97, 1
      %p101 = scmp.eq.s32.totalorder %s28, 1
      %p102 = scmp.ne.s32.totalorder %s97, %s99
      %p103 = scmp.eq.s32.totalorder %s28, 0
      %p104 = por %p102, %p103
      %p105 = scmp.ne.s32.totalorder %s97, %s99
      %p106 = scmp.eq.s32.totalorder %s33, 1
      %p107 = por %p105, %p106
      %p108 = scmp.ne.s32.totalorder %s99, %s100
      %p109 = scmp.eq.s32.totalorder %s33, 0
      %p110 = por %p108, %p109
      %p111 = scmp.ne.s32.totalorder %s99, %s100
      %p112 = scmp.eq.s32.totalorder %s34, 1
      %p113 = por %p111, %p112
      %p115 = scmp.ne.s32.totalorder %s100, %s114
      %p116 = scmp.eq.s32.totalorder %s34, 0
      %p117 = por %p115, %p116
      %s119 = sadd.s32 %s118, 1
      %p122 = scmp.eq.s32.totalorder %s28, 1
      %p123 = scmp.ne.s32.totalorder %s118, %s120
      %p124 = scmp.eq.s32.totalorder %s28, 0
      %p125 = por %p123, %p124
      %p126 = scmp.ne.s32.totalorder %s118, %s120
      %p127 = scmp.eq.s32.totalorder %s33, 1
      %p128 = por %p126, %p127
      %p129 = scmp.ne.s32.totalorder %s120, %s121
      %p130 = scmp.eq.s32.totalorder %s33, 0
      %p131 = por %p129, %p130
      %p132 = scmp.ne.s32.totalorder %s120, %s121
      %p133 = scmp.eq.s32.totalorder %s34, 1
      %p134 = por %p132, %p133
      %p136 = scmp.ne.s32.totalorder %s121, %s135
      %p137 = scmp.eq.s32.totalorder %s34, 0
      %p138 = por %p136, %p137
      %s140 = sadd.s32 %s139, 1
      %p143 = scmp.eq.s32.totalorder %s28, 1
      %p144 = scmp.ne.s32.totalorder %s139, %s141
      %p145 = scmp.eq.s32.totalorder %s28, 0
      %p146 = por %p144, %p145
      %p147 = scmp.ne.s32.totalorder %s139, %s141
      %p148 = scmp.eq.s32.totalorder %s33, 1
      %p149 = por %p147, %p148
      %p150 = scmp.ne.s32.totalorder %s141, %s142
      %p151 = scmp.eq.s32.totalorder %s33, 0
      %p152 = por %p150, %p151
      %p153 = scmp.ne.s32.totalorder %s141, %s142
      %p154 = scmp.eq.s32.totalorder %s34, 1
      %p155 = por %p153, %p154
      %p157 = scmp.ne.s32.totalorder %s142, %s156
      %p158 = scmp.eq.s32.totalorder %s34, 0
      %p159 = por %p157, %p158
      %s161 = sadd.s32 %s160, 1
      %p164 = scmp.eq.s32.totalorder %s28, 1
      %p165 = scmp.ne.s32.totalorder %s160, %s162
      %p166 = scmp.eq.s32.totalorder %s28, 0
      %p167 = por %p165, %p166
      %p168 = scmp.ne.s32.totalorder %s160, %s162
      %p169 = scmp.eq.s32.totalorder %s33, 1
      %p170 = por %p168, %p169
      %p171 = scmp.ne.s32.totalorder %s162, %s163
      %p172 = scmp.eq.s32.totalorder %s33, 0
      %p173 = por %p171, %p172
      %p174 = scmp.ne.s32.totalorder %s162, %s163
      %p175 = scmp.eq.s32.totalorder %s34, 1
      %p176 = por %p174, %p175
      %p178 = scmp.ne.s32.totalorder %s163, %s177
      %p179 = scmp.eq.s32.totalorder %s34, 0
      %p180 = por %p178, %p179
      %s182 = sadd.s32 %s181, 1
      %p185 = scmp.eq.s32.totalorder %s28, 1
      %p186 = scmp.ne.s32.totalorder %s181, %s183
      %p187 = scmp.eq.s32.totalorder %s28, 0
      %p188 = por %p186, %p187
      %p189 = scmp.ne.s32.totalorder %s181, %s183
      %p190 = scmp.eq.s32.totalorder %s33, 1
      %p191 = por %p189, %p190
      %p192 = scmp.ne.s32.totalorder %s183, %s184
      %p193 = scmp.eq.s32.totalorder %s33, 0
      %p194 = por %p192, %p193
      %p195 = scmp.ne.s32.totalorder %s183, %s184
      %p196 = scmp.eq.s32.totalorder %s34, 1
      %p197 = por %p195, %p196
      %p199 = scmp.ne.s32.totalorder %s184, %s198
      %p200 = scmp.eq.s32.totalorder %s34, 0
      %p201 = por %p199, %p200
      %s202 = ssub.s32 %s35, %s47
      %s203 = ssub.s32 %s36, %s43
      %s204 = sor.u32 %s202, %s203
      %p205 = scmp.eq.s32.totalorder %s204, 0
      %s207 = sadd.s32 %s206, 1
      %s208 = scalar_select %p205, %s206, %s207
      %p211 = pneg %p205
      %p212 = scmp.eq.s32.totalorder %s28, 1
      %p213 = por %p211, %p212
      %p214 = scmp.ne.s32.totalorder %s206, %s209
      %p215 = scmp.eq.s32.totalorder %s28, 0
      %p216 = por %p214, %p215
      %p217 = scmp.ne.s32.totalorder %s206, %s209
      %p218 = scmp.eq.s32.totalorder %s33, 1
      %p219 = por %p217, %p218
      %p220 = scmp.ne.s32.totalorder %s209, %s210
      %p221 = scmp.eq.s32.totalorder %s33, 0
      %p222 = por %p220, %p221
      %p223 = scmp.ne.s32.totalorder %s209, %s210
      %p224 = scmp.eq.s32.totalorder %s34, 1
      %p225 = por %p223, %p224
      %p227 = scmp.ne.s32.totalorder %s210, %s226
      %p228 = scmp.eq.s32.totalorder %s34, 0
      %p229 = por %p227, %p228
      %s230 = ssub.s32 %s35, %s47
      %s231 = ssub.s32 %s36, %s43
      %s232 = sor.u32 %s230, %s231
      %p233 = scmp.eq.s32.totalorder %s232, 0
      %s235 = sadd.s32 %s234, 1
      %s236 = scalar_select %p233, %s234, %s235
      %p239 = pneg %p233
      %p240 = scmp.eq.s32.totalorder %s28, 1
      %p241 = por %p239, %p240
      %p242 = scmp.ne.s32.totalorder %s234, %s237
      %p243 = scmp.eq.s32.totalorder %s28, 0
      %p244 = por %p242, %p243
      %p245 = scmp.ne.s32.totalorder %s234, %s237
      %p246 = scmp.eq.s32.totalorder %s33, 1
      %p247 = por %p245, %p246
      %p248 = scmp.ne.s32.totalorder %s237, %s238
      %p249 = scmp.eq.s32.totalorder %s33, 0
      %p250 = por %p248, %p249
      %p251 = scmp.ne.s32.totalorder %s237, %s238
      %p252 = scmp.eq.s32.totalorder %s34, 1
      %p253 = por %p251, %p252
      %p255 = scmp.ne.s32.totalorder %s238, %s254
      %p256 = scmp.eq.s32.totalorder %s34, 0
      %p257 = por %p255, %p256
      %s258 = ssub.s32 %s35, %s47
      %s259 = ssub.s32 %s36, %s43
      %s260 = sor.u32 %s258, %s259
      %p261 = scmp.eq.s32.totalorder %s260, 0
      %s263 = sadd.s32 %s262, 1
      %s264 = scalar_select %p261, %s262, %s263
      %p267 = pneg %p261
      %p268 = scmp.eq.s32.totalorder %s28, 1
      %p269 = por %p267, %p268
      %p270 = scmp.ne.s32.totalorder %s262, %s265
      %p271 = scmp.eq.s32.totalorder %s28, 0
      %p272 = por %p270, %p271
      %p273 = scmp.ne.s32.totalorder %s262, %s265
      %p274 = scmp.eq.s32.totalorder %s33, 1
      %p275 = por %p273, %p274
      %p276 = scmp.ne.s32.totalorder %s265, %s266
      %p277 = scmp.eq.s32.totalorder %s33, 0
      %p278 = por %p276, %p277
      %p279 = scmp.ne.s32.totalorder %s265, %s266
      %p280 = scmp.eq.s32.totalorder %s34, 1
      %p281 = por %p279, %p280
      %p283 = scmp.ne.s32.totalorder %s266, %s282
      %p284 = scmp.eq.s32.totalorder %s34, 0
      %p285 = por %p283, %p284
      %p286 = scmp.le.s32.totalorder 1, %s28
      %p287 = scmp.lt.s32.totalorder %s28, 3
      %p288 = pnand %p286, %p287
      %p289 = pneg %p288
      // Predicated region
      $region9: #{tpu_custom_call.1} parent=5 // pred_check
        _
      $region10: #{tpu_custom_call.1} parent=5 // pred_check_branch
        %291 = sbr.rel (%p288) target = $region12
      $region11: #{tpu_custom_call.1} parent=5 // pred_region
        %s292 = ssub.s32 %s28, 1
        // Predicated region
        $region13: #{tpu_custom_call.1} parent=11 // pred_check
          %p293 = pneg %p89
        $region14: #{tpu_custom_call.1} parent=11 // pred_check_branch
          %295 = sbr.rel (%p293) target = $region16
        $region15: #{tpu_custom_call.1} parent=11 // pred_region
          %s297 = ssub.s32 32, 32
          %298 = vsyncadd [#allocation6], %s297
          %s300 = sshll.u32 [#allocation5], 4
          %s301 = int_to_ptr.vmem [resolvable:$true] %s300
          %303 = dma.hbm_to_vmem [thread:$0]  %s1, 32, %s301, [#allocation6]
        $region16: #{tpu_custom_call.1} parent=11 // pred_fallthru
          _
        // Predicated region
        $region17: #{tpu_custom_call.1} parent=11 // pred_check
          %p304 = pneg %p110
        $region18: #{tpu_custom_call.1} parent=11 // pred_check_branch
          %306 = sbr.rel (%p304) target = $region20
        $region19: #{tpu_custom_call.1} parent=11 // pred_region
          %s308 = ssub.s32 64, 64
          %309 = vsyncadd [#allocation6], %s308
          %s311 = sshll.u32 [#allocation7], 4
          %s312 = int_to_ptr.vmem [resolvable:$true] %s311
          %314 = dma.hbm_to_vmem [thread:$0]  %s2, 64, %s312, [#allocation6]
        $region20: #{tpu_custom_call.1} parent=11 // pred_fallthru
          _
        // Predicated region
        $region21: #{tpu_custom_call.1} parent=11 // pred_check
          %p315 = pneg %p131
        $region22: #{tpu_custom_call.1} parent=11 // pred_check_branch
          %317 = sbr.rel (%p315) target = $region24
        $region23: #{tpu_custom_call.1} parent=11 // pred_region
          %s319 = ssub.s32 32, 32
          %320 = vsyncadd [#allocation9], %s319
          %s322 = sshll.u32 [#allocation8], 4
          %s323 = int_to_ptr.vmem [resolvable:$true] %s322
          %325 = dma.hbm_to_vmem [thread:$0]  %s3, 32, %s323, [#allocation9]
        $region24: #{tpu_custom_call.1} parent=11 // pred_fallthru
          _
        // Predicated region
        $region25: #{tpu_custom_call.1} parent=11 // pred_check
          %p326 = pneg %p152
        $region26: #{tpu_custom_call.1} parent=11 // pred_check_branch
          %328 = sbr.rel (%p326) target = $region28
        $region27: #{tpu_custom_call.1} parent=11 // pred_region
          %s330 = ssub.s32 64, 64
          %331 = vsyncadd [#allocation9], %s330
          %s333 = sshll.u32 [#allocation10], 4
          %s334 = int_to_ptr.vmem [resolvable:$true] %s333
          %336 = dma.hbm_to_vmem [thread:$0]  %s4, 64, %s334, [#allocation9]
        $region28: #{tpu_custom_call.1} parent=11 // pred_fallthru
          _
        // Predicated region
        $region29: #{tpu_custom_call.1} parent=11 // pred_check
          %p337 = pneg %p173
        $region30: #{tpu_custom_call.1} parent=11 // pred_check_branch
          %339 = sbr.rel (%p337) target = $region32
        $region31: #{tpu_custom_call.1} parent=11 // pred_region
          %s341 = ssub.s32 256, 256
          %342 = vsyncadd [#allocation12], %s341
          %s343 = sshll.u32 [#allocation11], 4
          %s344 = int_to_ptr.vmem [resolvable:$true] %s343
          %349 = dma.hbm_to_vmem [thread:$0]  %s5, 256, %s344, [#allocation12], 64, 64, 4
        $region32: #{tpu_custom_call.1} parent=11 // pred_fallthru
          _
        // Predicated region
        $region33: #{tpu_custom_call.1} parent=11 // pred_check
          %p350 = pneg %p194
        $region34: #{tpu_custom_call.1} parent=11 // pred_check_branch
          %352 = sbr.rel (%p350) target = $region36
        $region35: #{tpu_custom_call.1} parent=11 // pred_region
          %s354 = ssub.s32 512, 512
          %355 = vsyncadd [#allocation12], %s354
          %s356 = sshll.u32 [#allocation13], 4
          %s357 = int_to_ptr.vmem [resolvable:$true] %s356
          %362 = dma.hbm_to_vmem [thread:$0]  %s6, 512, %s357, [#allocation12], 128, 128, 8
        $region36: #{tpu_custom_call.1} parent=11 // pred_fallthru
          _
      $region12: #{tpu_custom_call.1} parent=5 // pred_fallthru
        _
      %p363 = scmp.lt.s32.totalorder %s28, 2
      // Predicated region
      $region37: #{tpu_custom_call.1} parent=5 // pred_check
        %p364 = pneg %p363
      $region38: #{tpu_custom_call.1} parent=5 // pred_check_branch
        %366 = sbr.rel (%p364) target = $region40
      $region39: #{tpu_custom_call.1} parent=5 // pred_region
        // Predicated region
        $region41: #{tpu_custom_call.1} parent=39 // pred_check
          %p367 = pneg %p62
        $region42: #{tpu_custom_call.1} parent=39 // pred_check_branch
          %369 = sbr.rel (%p367) target = $region44
        $region43: #{tpu_custom_call.1} parent=39 // pred_region
          %s370 = sand.u32 %s52, 1
          %s371 = scalar_lea.sflag [#allocation3], %s370
          %s372 = sand.u32 %s52, 1
          %s373 = smul.addr %s372, 64
          %s374 = scalar_lea.vmem [#allocation2], %s373
          %s375 = smul.u32 2, %s36
          %s377 = ssub.s32 1024, 1024
          %378 = vsyncadd %s371, %s377
          %s379 = smul.addr %s35, 8
          %s380 = sadd.s32 %s375, %s379
          %s381 = smul.addr %s380, 128
          %s382 = scalar_lea.hbm %s0, %s381
          %s383 = sshll.u32 %s374, 4
          %s384 = int_to_ptr.vmem [resolvable:$true] %s383
          %389 = dma.hbm_to_vmem [thread:$0]  %s382, 1024, %s384, %s371, 256, 256, 16
        $region44: #{tpu_custom_call.1} parent=39 // pred_fallthru
          _
      $region40: #{tpu_custom_call.1} parent=5 // pred_fallthru
        _
      %p390 = scmp.le.s32.totalorder 1, %s28
      %p391 = scmp.lt.s32.totalorder %s28, 3
      %p392 = pnand %p390, %p391
      %p393 = pneg %p392
      // Predicated region
      $region45: #{tpu_custom_call.1} parent=5 // pred_check
        _
      $region46: #{tpu_custom_call.1} parent=5 // pred_check_branch
        %395 = sbr.rel (%p392) target = $region48
      $region47: #{tpu_custom_call.1} parent=5 // pred_region
        %s396 = ssub.s32 %s28, 1
        %s397 = sand.u32 %s55, 1
        %s398 = scalar_lea.sflag [#allocation3], %s397
        %s399 = sand.u32 %s55, 1
        %s400 = smul.addr %s399, 64
        %s401 = scalar_lea.vmem [#allocation2], %s400
        // Predicated region
        $region49: #{tpu_custom_call.1} parent=47 // pred_check
          %p402 = pneg %p68
        $region50: #{tpu_custom_call.1} parent=47 // pred_check_branch
          %404 = sbr.rel (%p402) target = $region52
        $region51: #{tpu_custom_call.1} parent=47 // pred_region
          %405 = dma.done %s398, 1024
        $region52: #{tpu_custom_call.1} parent=47 // pred_fallthru
          _
        // Predicated region
        $region53: #{tpu_custom_call.1} parent=47 // pred_check
          %p406 = pneg %p89
        $region54: #{tpu_custom_call.1} parent=47 // pred_check_branch
          %408 = sbr.rel (%p406) target = $region56
        $region55: #{tpu_custom_call.1} parent=47 // pred_region
          %409 = dma.done [#allocation6], 32
        $region56: #{tpu_custom_call.1} parent=47 // pred_fallthru
          _
        // Predicated region
        $region57: #{tpu_custom_call.1} parent=47 // pred_check
          %p410 = pneg %p110
        $region58: #{tpu_custom_call.1} parent=47 // pred_check_branch
          %412 = sbr.rel (%p410) target = $region60
        $region59: #{tpu_custom_call.1} parent=47 // pred_region
          %413 = dma.done [#allocation6], 64
        $region60: #{tpu_custom_call.1} parent=47 // pred_fallthru
          _
        // Predicated region
        $region61: #{tpu_custom_call.1} parent=47 // pred_check
          %p414 = pneg %p131
        $region62: #{tpu_custom_call.1} parent=47 // pred_check_branch
          %416 = sbr.rel (%p414) target = $region64
        $region63: #{tpu_custom_call.1} parent=47 // pred_region
          %417 = dma.done [#allocation9], 32
        $region64: #{tpu_custom_call.1} parent=47 // pred_fallthru
          _
        // Predicated region
        $region65: #{tpu_custom_call.1} parent=47 // pred_check
          %p418 = pneg %p152
        $region66: #{tpu_custom_call.1} parent=47 // pred_check_branch
          %420 = sbr.rel (%p418) target = $region68
        $region67: #{tpu_custom_call.1} parent=47 // pred_region
          %421 = dma.done [#allocation9], 64
        $region68: #{tpu_custom_call.1} parent=47 // pred_fallthru
          _
        // Predicated region
        $region69: #{tpu_custom_call.1} parent=47 // pred_check
          %p422 = pneg %p173
        $region70: #{tpu_custom_call.1} parent=47 // pred_check_branch
          %424 = sbr.rel (%p422) target = $region72
        $region71: #{tpu_custom_call.1} parent=47 // pred_region
          %425 = dma.done [#allocation12], 256
        $region72: #{tpu_custom_call.1} parent=47 // pred_fallthru
          _
        // Predicated region
        $region73: #{tpu_custom_call.1} parent=47 // pred_check
          %p426 = pneg %p194
        $region74: #{tpu_custom_call.1} parent=47 // pred_check_branch
          %428 = sbr.rel (%p426) target = $region76
        $region75: #{tpu_custom_call.1} parent=47 // pred_region
          %429 = dma.done [#allocation12], 512
        $region76: #{tpu_custom_call.1} parent=47 // pred_fallthru
          _
        %s430 = sand.u32 %s55, 1
        %s431 = scalar_lea.sflag [#allocation3], %s430
        %s432 = sand.u32 %s55, 1
        %s433 = smul.addr %s432, 64
        %s434 = scalar_lea.vmem [#allocation2], %s433
        %p435 = pneg %p68
        %p436 = pneg %p65
        %p437 = pneg %p89
        %p438 = pneg %p86
        %p439 = pneg %p110
        %p440 = pneg %p107
        %p441 = pneg %p131
        %p442 = pneg %p128
        %p443 = pneg %p152
        %p444 = pneg %p149
        %p445 = pneg %p173
        %p446 = pneg %p170
        %p447 = pneg %p194
        %p448 = pneg %p191
        %p449 = pneg %p222
        %p450 = pneg %p219
        %s451 = sand.u32 %s209, 1
        %s452 = scalar_lea.sflag [#allocation4], %s451
        %s453 = sand.u32 %s209, 1
        %s454 = smul.addr %s453, 4
        %s455 = scalar_lea.vmem [#allocation14], %s454
        %p456 = pneg %p250
        %p457 = pneg %p247
        %s458 = sand.u32 %s33, 1
        %s459 = scalar_lea.sflag [#allocation16], %s458
        %s460 = sand.u32 %s237, 1
        %s461 = smul.addr %s460, 4
        %s462 = scalar_lea.vmem [#allocation15], %s461
        %p463 = pneg %p278
        %p464 = pneg %p275
        %s465 = sand.u32 %s33, 1
        %s466 = scalar_lea.sflag [#allocation16], %s465
        %s467 = sand.u32 %s265, 1
        %s468 = smul.addr %s467, 32
        %s469 = scalar_lea.vmem [#allocation17], %s468
        %s470 = smul.u32 2, %s38
        %s471 = smul.u32 2, %s38
        %s472 = smul.u32 2, %s38
        %s473 = smul.u32 2, %s38
        %v475 = vld [vmem:[%s401] sm:$0xff]
        %v476 = vld [vmem:[%s401 + $0x8] sm:$0xff]
        %v477 = vld [vmem:[%s401 + $0x10] sm:$0xff]
        %v478 = vld [vmem:[%s401 + $0x18] sm:$0xff]
        %v479 = vld [vmem:[%s401 + $0x20] sm:$0xff]
        %v480 = vld [vmem:[%s401 + $0x28] sm:$0xff]
        %v481 = vld [vmem:[%s401 + $0x30] sm:$0xff]
        %v482 = vld [vmem:[%s401 + $0x38] sm:$0xff]
        %v483 = vpack.c.bf16 %v477, %v475
        %v484 = vpack.c.bf16 %v478, %v476
        %v485 = vpack.c.bf16 %v481, %v479
        %v486 = vpack.c.bf16 %v482, %v480
        %v487 = vld [vmem:[#allocation5] sm:$0x3]
        %v488 = vld [vmem:[#allocation7] sm:$0xf]
        %490 = vset.pattern.permute.xlu0 0
        %491 = vperm.xlu0 %490, %v488
        %v492 = vpop.permute.xlu0 %491
        %vm494 = vcmask 261120
        %v496 = vsel %vm494, %v487, 0
        %498 = vmatprep.subr.bf16.mxu0 %v484
        %499 = vmatpush1.bf16.msra.mxu0 %v483
        %500 = vmatprep.subr.bf16.mxu0 %v486
        %501 = vmatpush1.bf16.msra.mxu0 %v485
        %502 = vmatprep.subr.bf16.mxu0 0
        %503 = vmatpush1.bf16.msra.mxu0 0
        %504 = vmatprep.subr.bf16.mxu0 0
        %505 = vmatpush1.bf16.msra.mxu0 0
        %506 = vmatprep.subr.bf16.mxu0 0
        %507 = vmatpush1.bf16.msra.mxu0 0
        %508 = vmatprep.subr.bf16.mxu0 0
        %509 = vmatpush1.bf16.msra.mxu0 0
        %510 = vmatprep.subr.bf16.mxu0 0
        %511 = vmatpush1.bf16.msra.mxu0 0
        %512 = vmatprep.subr.bf16.mxu0 0
        %513 = vmatpush1.bf16.msra.mxu0 0
        %514 = vmatprep.subr.bf16.mxu0 0
        %515 = vmatpush1.bf16.msra.mxu0 0
        %516 = vmatprep.subr.bf16.mxu0 0
        %517 = vmatpush1.bf16.msra.mxu0 0
        %518 = vmatprep.subr.bf16.mxu0 0
        %519 = vmatpush1.bf16.msra.mxu0 0
        %520 = vmatprep.subr.bf16.mxu0 0
        %521 = vmatpush1.bf16.msra.mxu0 0
        %522 = vmatprep.subr.bf16.mxu0 0
        %523 = vmatpush1.bf16.msra.mxu0 0
        %524 = vmatprep.subr.bf16.mxu0 0
        %525 = vmatpush1.bf16.msra.mxu0 0
        %526 = vmatprep.subr.bf16.mxu0 0
        %527 = vmatpush1.bf16.msra.mxu0 0
        %528 = vmatprep.subr.bf16.mxu0 0
        %529 = vmatpush1.bf16.msra.mxu0 0
        %530 = vmatprep.mubr.bf16.mxu0 0
        %531 = vmatmul.mubr.bf16.gmra.mrb[0].mxu0 %v496
        %v532 = vpop.f32.mrb[0].mxu0
        %v533 = vadd.f32 %v492, %v532
        %v534 = vpop.f32.mrb[0].mxu0
        %v535 = vadd.f32 %v492, %v534
        %v536 = vpop.f32.mrb[0].mxu0
        %v537 = vpop.f32.mrb[0].mxu0
        %538 = vdwg.mxu0
        %v539 = vld [vmem:[#allocation8] sm:$0x3]
        %v540 = vld [vmem:[#allocation10] sm:$0xf]
        %542 = vset.pattern.permute.xlu0 0
        %543 = vperm.xlu0 %542, %v540
        %v544 = vpop.permute.xlu0 %543
        %v547 = vsel %vm494, %v539, 0
        %549 = vmatprep.subr.bf16.mxu0 %v484
        %550 = vmatpush1.bf16.msra.mxu0 %v483
        %551 = vmatprep.subr.bf16.mxu0 %v486
        %552 = vmatpush1.bf16.msra.mxu0 %v485
        %553 = vmatprep.subr.bf16.mxu0 0
        %554 = vmatpush1.bf16.msra.mxu0 0
        %555 = vmatprep.subr.bf16.mxu0 0
        %556 = vmatpush1.bf16.msra.mxu0 0
        %557 = vmatprep.subr.bf16.mxu0 0
        %558 = vmatpush1.bf16.msra.mxu0 0
        %559 = vmatprep.subr.bf16.mxu0 0
        %560 = vmatpush1.bf16.msra.mxu0 0
        %561 = vmatprep.subr.bf16.mxu0 0
        %562 = vmatpush1.bf16.msra.mxu0 0
        %563 = vmatprep.subr.bf16.mxu0 0
        %564 = vmatpush1.bf16.msra.mxu0 0
        %565 = vmatprep.subr.bf16.mxu0 0
        %566 = vmatpush1.bf16.msra.mxu0 0
        %567 = vmatprep.subr.bf16.mxu0 0
        %568 = vmatpush1.bf16.msra.mxu0 0
        %569 = vmatprep.subr.bf16.mxu0 0
        %570 = vmatpush1.bf16.msra.mxu0 0
        %571 = vmatprep.subr.bf16.mxu0 0
        %572 = vmatpush1.bf16.msra.mxu0 0
        %573 = vmatprep.subr.bf16.mxu0 0
        %574 = vmatpush1.bf16.msra.mxu0 0
        %575 = vmatprep.subr.bf16.mxu0 0
        %576 = vmatpush1.bf16.msra.mxu0 0
        %577 = vmatprep.subr.bf16.mxu0 0
        %578 = vmatpush1.bf16.msra.mxu0 0
        %579 = vmatprep.subr.bf16.mxu0 0
        %580 = vmatpush1.bf16.msra.mxu0 0
        %581 = vmatprep.mubr.bf16.mxu0 0
        %582 = vmatmul.mubr.bf16.gmra.mrb[0].mxu0 %v547
        %v583 = vpop.f32.mrb[0].mxu0
        %v584 = vadd.f32 %v544, %v583
        %v585 = vpop.f32.mrb[0].mxu0
        %v586 = vadd.f32 %v544, %v585
        %v587 = vpop.f32.mrb[0].mxu0
        %v588 = vpop.f32.mrb[0].mxu0
        %589 = vdwg.mxu0
        %v590 = vld [vmem:[#allocation11] sm:$0xf]
        %v591 = vld [vmem:[#allocation11 + $0x4] sm:$0xf]
        %v592 = vld [vmem:[#allocation11 + $0x8] sm:$0xf]
        %v593 = vld [vmem:[#allocation11 + $0xc] sm:$0xf]
        %v594 = vld [vmem:[#allocation13] sm:$0xff]
        %v595 = vld [vmem:[#allocation13 + $0x8] sm:$0xff]
        %v596 = vld [vmem:[#allocation13 + $0x10] sm:$0xff]
        %v597 = vld [vmem:[#allocation13 + $0x18] sm:$0xff]
        %599 = vset.pattern.permute.xlu0 0
        %600 = vperm.xlu0 %599, %v594
        %v601 = vpop.permute.xlu0 %600
        %604 = vset.pattern.permute.xlu0 0
        %605 = vperm.xlu0 %604, %v595
        %v606 = vpop.permute.xlu0 %605
        %609 = vset.pattern.permute.xlu0 0
        %610 = vperm.xlu0 %609, %v596
        %v611 = vpop.permute.xlu0 %610
        %614 = vset.pattern.permute.xlu0 0
        %615 = vperm.xlu0 %614, %v597
        %v616 = vpop.permute.xlu0 %615
        %v622 = vunpack.c.l.b16 %v590
        %v623 = vunpack.c.l.b16 %v591
        %v624 = vunpack.c.l.b16 %v592
        %v625 = vunpack.c.l.b16 %v593
        %v626 = vpack.c.b16 %v623, %v622
        %v627 = vpack.c.b16 %v625, %v624
        %v629 = vsel %vm494, %v626, 0
        %v632 = vsel %vm494, %v627, 0
        %634 = vmatprep.subr.bf16.mxu0 %v484
        %635 = vmatpush1.bf16.msra.mxu0 %v483
        %636 = vmatprep.subr.bf16.mxu0 %v486
        %637 = vmatpush1.bf16.msra.mxu0 %v485
        %638 = vmatprep.subr.bf16.mxu0 0
        %639 = vmatpush1.bf16.msra.mxu0 0
        %640 = vmatprep.subr.bf16.mxu0 0
        %641 = vmatpush1.bf16.msra.mxu0 0
        %642 = vmatprep.subr.bf16.mxu0 0
        %643 = vmatpush1.bf16.msra.mxu0 0
        %644 = vmatprep.subr.bf16.mxu0 0
        %645 = vmatpush1.bf16.msra.mxu0 0
        %646 = vmatprep.subr.bf16.mxu0 0
        %647 = vmatpush1.bf16.msra.mxu0 0
        %648 = vmatprep.subr.bf16.mxu0 0
        %649 = vmatpush1.bf16.msra.mxu0 0
        %650 = vmatprep.subr.bf16.mxu0 0
        %651 = vmatpush1.bf16.msra.mxu0 0
        %652 = vmatprep.subr.bf16.mxu0 0
        %653 = vmatpush1.bf16.msra.mxu0 0
        %654 = vmatprep.subr.bf16.mxu0 0
        %655 = vmatpush1.bf16.msra.mxu0 0
        %656 = vmatprep.subr.bf16.mxu0 0
        %657 = vmatpush1.bf16.msra.mxu0 0
        %658 = vmatprep.subr.bf16.mxu0 0
        %659 = vmatpush1.bf16.msra.mxu0 0
        %660 = vmatprep.subr.bf16.mxu0 0
        %661 = vmatpush1.bf16.msra.mxu0 0
        %662 = vmatprep.subr.bf16.mxu0 0
        %663 = vmatpush1.bf16.msra.mxu0 0
        %664 = vmatprep.subr.bf16.mxu0 0
        %665 = vmatpush1.bf16.msra.mxu0 0
        %666 = vmatprep.mubr.bf16.mxu0 0
        %667 = vmatmul.mubr.bf16.gmra.mrb[0].mxu0 %v629
        %v668 = vpop.f32.mrb[0].mxu0
        %v669 = vadd.f32 %v601, %v668
        %v670 = vpop.f32.mrb[0].mxu0
        %v671 = vadd.f32 %v601, %v670
        %v672 = vpop.f32.mrb[0].mxu0
        %v673 = vadd.f32 %v606, %v672
        %v674 = vpop.f32.mrb[0].mxu0
        %v675 = vadd.f32 %v606, %v674
        %676 = vmatprep.mubr.bf16.mxu0 0
        %677 = vmatmul.mubr.bf16.gmra.mrb[0].mxu0 %v632
        %v678 = vpop.f32.mrb[0].mxu0
        %v679 = vadd.f32 %v611, %v678
        %v680 = vpop.f32.mrb[0].mxu0
        %v681 = vadd.f32 %v611, %v680
        %v682 = vpop.f32.mrb[0].mxu0
        %v683 = vadd.f32 %v616, %v682
        %v684 = vpop.f32.mrb[0].mxu0
        %v685 = vadd.f32 %v616, %v684
        %686 = vdwg.mxu0
        %v687 = vpack.c.bf16 %v533, %v533
        %v688 = vpack.c.bf16 %v535, %v535
        %v691 = vcombine.low %v687, %v688
        %v693 = vunpack.c.l.s4 1983009808
        %v694 = vunpack.c.0.s8 %v693
        %v695 = vlaneseq
        %v696 = vshrl.u32 %v695, 7
        %v697 = vsub.s32 %v694, %v696
        %v698 = vrot.slane %v691, %v697
        %700 = vst [vmem:[%s455] sm:$0xf] %v698
        %v701 = vpack.c.bf16 %v584, %v584
        %v702 = vpack.c.bf16 %v586, %v586
        %v705 = vcombine.low %v701, %v702
        %v707 = vunpack.c.l.s4 1983009808
        %v708 = vunpack.c.0.s8 %v707
        %v709 = vlaneseq
        %v710 = vshrl.u32 %v709, 7
        %v711 = vsub.s32 %v708, %v710
        %v712 = vrot.slane %v705, %v711
        %714 = vst [vmem:[%s462] sm:$0xf] %v712
        %v715 = vpack.c.bf16 %v673, %v669
        %v716 = vpack.c.bf16 %v675, %v671
        %v717 = vpack.c.bf16 %v683, %v679
        %v718 = vpack.c.bf16 %v685, %v681
        %v723 = vunpack.c.l.b16 %v715
        %v724 = vunpack.c.l.b16 %v716
        %v725 = vunpack.c.h.b16 %v715
        %v726 = vunpack.c.h.b16 %v716
        %v727 = vunpack.c.l.b16 %v717
        %v728 = vunpack.c.l.b16 %v718
        %v729 = vunpack.c.h.b16 %v717
        %v730 = vunpack.c.h.b16 %v718
        %v731 = vpack.c.b16 %v724, %v723
        %v732 = vpack.c.b16 %v726, %v725
        %v733 = vpack.c.b16 %v728, %v727
        %v734 = vpack.c.b16 %v730, %v729
        %739 = vst [vmem:[%s469] sm:$0xff] %v731
        %740 = vst [vmem:[%s469 + $0x8] sm:$0xff] %v732
        %741 = vst [vmem:[%s469 + $0x10] sm:$0xff] %v733
        %742 = vst [vmem:[%s469 + $0x18] sm:$0xff] %v734
        %s743 = sand.u32 %s209, 1
        %s744 = scalar_lea.sflag [#allocation4], %s743
        %s745 = sand.u32 %s209, 1
        %s746 = smul.addr %s745, 4
        %s747 = scalar_lea.vmem [#allocation14], %s746
        %s748 = sand.u32 %s33, 1
        %s749 = scalar_lea.sflag [#allocation16], %s748
        %s750 = sand.u32 %s237, 1
        %s751 = smul.addr %s750, 4
        %s752 = scalar_lea.vmem [#allocation15], %s751
        %s753 = sand.u32 %s33, 1
        %s754 = scalar_lea.sflag [#allocation16], %s753
        %s755 = sand.u32 %s265, 1
        %s756 = smul.addr %s755, 32
        %s757 = scalar_lea.vmem [#allocation17], %s756
        // Predicated region
        $region77: #{tpu_custom_call.1} parent=47 // pred_check
          %p758 = pneg %p219
        $region78: #{tpu_custom_call.1} parent=47 // pred_check_branch
          %760 = sbr.rel (%p758) target = $region80
        $region79: #{tpu_custom_call.1} parent=47 // pred_region
          %s761 = smul.u32 2, %s38
          %s763 = ssub.s32 64, 64
          %764 = vsyncadd %s744, %s763
          %s765 = smul.addr %s37, 2
          %s766 = sadd.s32 %s761, %s765
          %s767 = smul.addr %s766, 32
          %s768 = scalar_lea.hbm %s7, %s767
          %s770 = sshll.u32 %s747, 4
          %s771 = int_to_ptr.vmem [resolvable:$true] %s770
          %773 = dma.vmem_to_hbm [thread:$0]  %s771, 64, %s768, %s744
        $region80: #{tpu_custom_call.1} parent=47 // pred_fallthru
          _
        // Predicated region
        $region81: #{tpu_custom_call.1} parent=47 // pred_check
          %p774 = pneg %p247
        $region82: #{tpu_custom_call.1} parent=47 // pred_check_branch
          %776 = sbr.rel (%p774) target = $region84
        $region83: #{tpu_custom_call.1} parent=47 // pred_region
          %s777 = smul.u32 2, %s38
          %s779 = ssub.s32 64, 64
          %780 = vsyncadd %s749, %s779
          %s781 = smul.addr %s37, 2
          %s782 = sadd.s32 %s777, %s781
          %s783 = smul.addr %s782, 32
          %s784 = scalar_lea.hbm %s8, %s783
          %s786 = sshll.u32 %s752, 4
          %s787 = int_to_ptr.vmem [resolvable:$true] %s786
          %789 = dma.vmem_to_hbm [thread:$0]  %s787, 64, %s784, %s749
        $region84: #{tpu_custom_call.1} parent=47 // pred_fallthru
          _
        // Predicated region
        $region85: #{tpu_custom_call.1} parent=47 // pred_check
          %p790 = pneg %p275
        $region86: #{tpu_custom_call.1} parent=47 // pred_check_branch
          %792 = sbr.rel (%p790) target = $region88
        $region87: #{tpu_custom_call.1} parent=47 // pred_region
          %s793 = smul.u32 2, %s38
          %s795 = ssub.s32 512, 512
          %796 = vsyncadd %s754, %s795
          %s797 = smul.addr %s37, 8
          %s798 = sadd.s32 %s793, %s797
          %s799 = smul.addr %s798, 64
          %s800 = scalar_lea.hbm %s9, %s799
          %s801 = sshll.u32 %s757, 4
          %s802 = int_to_ptr.vmem [resolvable:$true] %s801
          %807 = dma.vmem_to_hbm [thread:$0]  %s802, 512, %s800, %s754, 128, 128, 8
        $region88: #{tpu_custom_call.1} parent=47 // pred_fallthru
          _
      $region48: #{tpu_custom_call.1} parent=5 // pred_fallthru
        _
      %p808 = scmp.le.s32.totalorder 2, %s28
      // Predicated region
      $region89: #{tpu_custom_call.1} parent=5 // pred_check
        %p809 = pneg %p808
      $region90: #{tpu_custom_call.1} parent=5 // pred_check_branch
        %811 = sbr.rel (%p809) target = $region92
      $region91: #{tpu_custom_call.1} parent=5 // pred_region
        %s812 = ssub.s32 %s28, 2
        // Predicated region
        $region93: #{tpu_custom_call.1} parent=91 // pred_check
          %p813 = pneg %p225
        $region94: #{tpu_custom_call.1} parent=91 // pred_check_branch
          %815 = sbr.rel (%p813) target = $region96
        $region95: #{tpu_custom_call.1} parent=91 // pred_region
          %s816 = sand.u32 %s210, 1
          %s817 = scalar_lea.sflag [#allocation4], %s816
          %s818 = sand.u32 %s210, 1
          %s819 = smul.addr %s818, 4
          %s820 = scalar_lea.vmem [#allocation14], %s819
          %821 = dma.done %s817, 64
        $region96: #{tpu_custom_call.1} parent=91 // pred_fallthru
          _
        // Predicated region
        $region97: #{tpu_custom_call.1} parent=91 // pred_check
          %p822 = pneg %p253
        $region98: #{tpu_custom_call.1} parent=91 // pred_check_branch
          %824 = sbr.rel (%p822) target = $region100
        $region99: #{tpu_custom_call.1} parent=91 // pred_region
          %s825 = sand.u32 %s34, 1
          %s826 = scalar_lea.sflag [#allocation16], %s825
          %s827 = sand.u32 %s238, 1
          %s828 = smul.addr %s827, 4
          %s829 = scalar_lea.vmem [#allocation15], %s828
          %830 = dma.done %s826, 64
        $region100: #{tpu_custom_call.1} parent=91 // pred_fallthru
          _
        // Predicated region
        $region101: #{tpu_custom_call.1} parent=91 // pred_check
          %p831 = pneg %p281
        $region102: #{tpu_custom_call.1} parent=91 // pred_check_branch
          %833 = sbr.rel (%p831) target = $region104
        $region103: #{tpu_custom_call.1} parent=91 // pred_region
          %s834 = sand.u32 %s34, 1
          %s835 = scalar_lea.sflag [#allocation16], %s834
          %s836 = sand.u32 %s266, 1
          %s837 = smul.addr %s836, 32
          %s838 = scalar_lea.vmem [#allocation17], %s837
          %839 = dma.done %s835, 512
        $region104: #{tpu_custom_call.1} parent=91 // pred_fallthru
          _
      $region92: #{tpu_custom_call.1} parent=5 // pred_fallthru
        _
    $region6: #{tpu_custom_call.1} parent=1 // loop_footer
      %s32 = sadd.s32 1, %s28
    $region7: #{tpu_custom_call.1} parent=1 // loop_footer_branch
      %27 = sbr.rel target = $region3
    $region8: #{tpu_custom_call.1} parent=1 // loop_exit
      _
    %840 = vsyncpa [#allocation3], 1
    %s841 = scalar_lea.sflag [#allocation3], 1
    %842 = vsyncpa %s841, 1
    %843 = vsyncpa [#allocation6], 1
    %844 = vsyncpa [#allocation9], 1
    %845 = vsyncpa [#allocation12], 1
    %846 = vsyncpa [#allocation4], 1
    %s847 = scalar_lea.sflag [#allocation4], 1
    %848 = vsyncpa %s847, 1
    %849 = vsyncpa [#allocation16], 1
    %s850 = scalar_lea.sflag [#allocation16], 1
    %851 = vsyncpa %s850, 1

</llo_original>
